<compile_context>
chip_gen: v5e
topology: v5e:2x2
jax: 0.10.0
libtpu: 0.0.40
codegen_flags: <defaults>
</compile_context>

<pallas_src>
import math
import functools

import jax
import jax.numpy as jnp
from jax.experimental import pallas as pl
from jax.experimental.pallas import tpu as pltpu


# ----------------------------------------------------------------------------
# Tiling helpers
# ----------------------------------------------------------------------------

# Tile targets (collapse to the full dim at demo scale). Sized so that with
# bf16 operands and double-buffering the working set stays well under the
# 32 MiB default scoped VMEM on every generation (v5e/v6e 128 MiB, v7x 64 MiB).
TILE_M = 256
TILE_N = 256
TILE_K = 512
VMEM_LIMIT = 48 * 1024 * 1024  # explicit, with headroom below v7x's 64 MiB


def _tile(dim, target, mult):
    """Largest tile <= target that divides `dim` and is a multiple of `mult`
    (falls back to the whole dim, which is always a legal block shape)."""
    if dim <= target:
        return dim
    t = (min(target, dim) // mult) * mult
    while t >= mult:
        if dim % t == 0:
            return t
        t -= mult
    return dim


# ----------------------------------------------------------------------------
# Pallas kernels
# ----------------------------------------------------------------------------

def _rmsnorm_matmul_kernel(x_ref, nw_ref, w_ref, o_ref, *, eps):
    # RMSNorm in f32, then feed bf16 operands to the MXU.
    x = x_ref[...]                                        # [tm, D] f32
    ms = jnp.mean(x * x, axis=-1, keepdims=True)
    xn = (x * jax.lax.rsqrt(ms + eps)) * nw_ref[...]
    o_ref[...] = jnp.dot(xn.astype(jnp.bfloat16), w_ref[...],
                         preferred_element_type=jnp.float32)


def rmsnorm_matmul(x, norm_w, w, eps):
    """out = rmsnorm(x; norm_w) @ w.
    x: [M, D] f32, norm_w: [1, D] f32, w: [D, N] bf16 -> [M, N] f32.
    The norm reduction needs the full D, so only M and N are tiled."""
    M, D = x.shape
    D2, N = w.shape
    assert D == D2
    tm = _tile(M, TILE_M, 8)
    tn = _tile(N, TILE_N, 128)
    return pl.pallas_call(
        functools.partial(_rmsnorm_matmul_kernel, eps=eps),
        out_shape=jax.ShapeDtypeStruct((M, N), jnp.float32),
        grid=(M // tm, N // tn),
        in_specs=[pl.BlockSpec((tm, D), lambda i, j: (i, 0)),
                  pl.BlockSpec((1, D), lambda i, j: (0, 0)),
                  pl.BlockSpec((D, tn), lambda i, j: (0, j))],
        out_specs=pl.BlockSpec((tm, tn), lambda i, j: (i, j)),
        compiler_params=pltpu.CompilerParams(
            dimension_semantics=("parallel", "parallel"),
            vmem_limit_bytes=VMEM_LIMIT),
    )(x, norm_w, w)


def _matmul_residual_kernel(a_ref, b_ref, r_ref, o_ref, acc_ref):
    @pl.when(pl.program_id(2) == 0)
    def _():
        acc_ref[...] = jnp.zeros_like(acc_ref)

    acc_ref[...] += jnp.dot(a_ref[...], b_ref[...],
                            preferred_element_type=jnp.float32)

    @pl.when(pl.program_id(2) == pl.num_programs(2) - 1)
    def _():
        o_ref[...] = acc_ref[...] + r_ref[...]


def matmul_residual(a, b, res):
    """out = a @ b + res.  a: [M, K] bf16, b: [K, N] bf16, res: [M, N] f32."""
    M, K = a.shape
    K2, N = b.shape
    assert K == K2 and res.shape == (M, N)
    tm = _tile(M, TILE_M, 8)
    tn = _tile(N, TILE_N, 128)
    tk = _tile(K, TILE_K, 128)
    return pl.pallas_call(
        _matmul_residual_kernel,
        out_shape=jax.ShapeDtypeStruct((M, N), jnp.float32),
        grid=(M // tm, N // tn, K // tk),
        in_specs=[pl.BlockSpec((tm, tk), lambda i, j, k: (i, k)),
                  pl.BlockSpec((tk, tn), lambda i, j, k: (k, j)),
                  pl.BlockSpec((tm, tn), lambda i, j, k: (i, j))],
        out_specs=pl.BlockSpec((tm, tn), lambda i, j, k: (i, j)),
        scratch_shapes=[pltpu.VMEM((tm, tn), jnp.float32)],
        compiler_params=pltpu.CompilerParams(
            dimension_semantics=("parallel", "parallel", "arbitrary"),
            vmem_limit_bytes=VMEM_LIMIT),
    )(a, b, res)


def _gate_matmul_residual_kernel(g1_ref, g3_ref, w_ref, r_ref, o_ref, acc_ref):
    @pl.when(pl.program_id(2) == 0)
    def _():
        acc_ref[...] = jnp.zeros_like(acc_ref)

    g1 = g1_ref[...]                                   # f32 SiLU (v5e-safe)
    gated = (g1 * jax.nn.sigmoid(g1) * g3_ref[...]).astype(jnp.bfloat16)
    acc_ref[...] += jnp.dot(gated, w_ref[...],
                            preferred_element_type=jnp.float32)

    @pl.when(pl.program_id(2) == pl.num_programs(2) - 1)
    def _():
        o_ref[...] = acc_ref[...] + r_ref[...]


def gate_matmul_residual(g1, g3, w2, res):
    """out = (silu(g1) * g3) @ w2 + res, with the gated activation never
    written to HBM.  g1/g3: [M, H] f32, w2: [H, N] bf16, res: [M, N] f32."""
    M, Hd = g1.shape
    H2, N = w2.shape
    assert Hd == H2 and g3.shape == g1.shape and res.shape == (M, N)
    tm = _tile(M, TILE_M, 8)
    tn = _tile(N, TILE_N, 128)
    tk = _tile(Hd, TILE_K, 128)
    return pl.pallas_call(
        _gate_matmul_residual_kernel,
        out_shape=jax.ShapeDtypeStruct((M, N), jnp.float32),
        grid=(M // tm, N // tn, Hd // tk),
        in_specs=[pl.BlockSpec((tm, tk), lambda i, j, k: (i, k)),
                  pl.BlockSpec((tm, tk), lambda i, j, k: (i, k)),
                  pl.BlockSpec((tk, tn), lambda i, j, k: (k, j)),
                  pl.BlockSpec((tm, tn), lambda i, j, k: (i, j))],
        out_specs=pl.BlockSpec((tm, tn), lambda i, j, k: (i, j)),
        scratch_shapes=[pltpu.VMEM((tm, tn), jnp.float32)],
        compiler_params=pltpu.CompilerParams(
            dimension_semantics=("parallel", "parallel", "arbitrary"),
            vmem_limit_bytes=VMEM_LIMIT),
    )(g1, g3, w2, res)


def _attention_kernel(q_ref, k_ref, v_ref, m_ref, o_ref, *, scale):
    q = q_ref[0, 0].astype(jnp.bfloat16)               # [S, hd]
    k = k_ref[0, 0].astype(jnp.bfloat16)               # [T, hd]
    v = v_ref[0, 0].astype(jnp.bfloat16)               # [T, hd]
    # scores = q @ k^T (contract on head_dim), f32 accumulation on the MXU
    s = jax.lax.dot_general(q, k, (((1,), (1,)), ((), ())),
                            preferred_element_type=jnp.float32)
    s = s * scale + m_ref[...]                          # [S, T] f32
    mx = jnp.max(s, axis=-1, keepdims=True)
    e = jnp.exp(s - mx)
    p = e * pl.reciprocal(jnp.sum(e, axis=-1, keepdims=True), approx=True)
    o_ref[0, 0] = jnp.dot(p.astype(jnp.bfloat16), v,
                          preferred_element_type=jnp.float32)


def pallas_attention(q, k, v, mask, n_rep, head_dim):
    """q: [B, H, S, hd] f32; k/v: [B, Hk, T, hd] f32 (NOT repeated — GQA head
    sharing is done in the K/V index_map); mask: [S, T] f32 -> [B, H, S, hd]."""
    B, H, S, hd = q.shape
    _, Hk, T, _ = k.shape
    scale = 1.0 / math.sqrt(head_dim)
    return pl.pallas_call(
        functools.partial(_attention_kernel, scale=scale),
        out_shape=jax.ShapeDtypeStruct((B, H, S, hd), jnp.float32),
        grid=(B, H),
        in_specs=[
            pl.BlockSpec((1, 1, S, hd), lambda b, h: (b, h, 0, 0)),
            pl.BlockSpec((1, 1, T, hd), lambda b, h: (b, h // n_rep, 0, 0)),
            pl.BlockSpec((1, 1, T, hd), lambda b, h: (b, h // n_rep, 0, 0)),
            pl.BlockSpec((S, T), lambda b, h: (0, 0)),
        ],
        out_specs=pl.BlockSpec((1, 1, S, hd), lambda b, h: (b, h, 0, 0)),
        compiler_params=pltpu.CompilerParams(
            dimension_semantics=("parallel", "parallel"),
            vmem_limit_bytes=VMEM_LIMIT),
    )(q, k, v, mask)


# ----------------------------------------------------------------------------
# Model glue (plain JAX): RoPE, KV cache, parameter init
# ----------------------------------------------------------------------------

def precompute_freqs_cos_sin(dim, end, theta=10000.0):
    freqs = 1.0 / (theta ** (jnp.arange(0, dim, 2)[: dim // 2].astype(jnp.float32) / dim))
    t = jnp.arange(end, dtype=jnp.float32)
    angles = jnp.outer(t, freqs)               # [end, dim//2]
    return jnp.cos(angles), jnp.sin(angles)


def apply_rotary_emb(xq, xk, cos, sin):
    # Interleaved (complex) rotation, matching torch.view_as_complex semantics.
    # xq: [B, S, Hq, hd]; xk: [B, S, Hk, hd]; cos/sin: [S, hd//2]
    # TODO(synk): fusing RoPE into the QKV kernel via pltpu.roll needs the
    # half-rotation layout (a weight permutation); kept as JAX glue here.
    def rot(x):
        B, S, H, hd = x.shape
        xr = x.reshape(B, S, H, hd // 2, 2)
        even, odd = xr[..., 0], xr[..., 1]
        c = cos[None, :, None, :]
        s = sin[None, :, None, :]
        out_even = even * c - odd * s
        out_odd = even * s + odd * c
        return jnp.stack([out_even, out_odd], axis=-1).reshape(B, S, H, hd)
    return rot(xq), rot(xk)


def init_kv_caches(cfg):
    Hk = cfg["n_kv_heads"]
    hd = cfg["dim"] // cfg["n_heads"]
    shape = (cfg["max_batch_size"], cfg["max_seq_len"], Hk, hd)
    return [(jnp.zeros(shape, jnp.float32), jnp.zeros(shape, jnp.float32))
            for _ in range(cfg["n_layers"])]


def init_params(key, cfg):
    D = cfg["dim"]
    H = cfg["n_heads"]
    Hk = cfg["n_kv_heads"]
    hd = D // H
    V = cfg["vocab_size"]

    hidden_dim = 4 * D
    hidden_dim = int(2 * hidden_dim / 3)
    if cfg["ffn_dim_multiplier"] is not None:
        hidden_dim = int(cfg["ffn_dim_multiplier"] * hidden_dim)
    mo = cfg["multiple_of"]
    hidden_dim = mo * ((hidden_dim + mo - 1) // mo)
    cfg["hidden_dim"] = hidden_dim

    keys = jax.random.split(key, 2 + cfg["n_layers"])
    params = {
        "tok_embeddings": jax.random.normal(keys[0], (V, D), jnp.float32) * 0.02,
        "norm_w": jnp.ones((1, D), jnp.float32),
        "output_w": (jax.random.normal(keys[1], (D, V), jnp.float32) * 0.02
                     ).astype(jnp.bfloat16),
        "layers": [],
    }
    for lk in keys[2:]:
        k = jax.random.split(lk, 7)
        wq = jax.random.normal(k[0], (D, H * hd), jnp.float32) * 0.02
        wk = jax.random.normal(k[1], (D, Hk * hd), jnp.float32) * 0.02
        wv = jax.random.normal(k[2], (D, Hk * hd), jnp.float32) * 0.02
        w1 = jax.random.normal(k[4], (D, hidden_dim), jnp.float32) * 0.02
        w3 = jax.random.normal(k[6], (D, hidden_dim), jnp.float32) * 0.02
        layer = {
            # fused projection weights (bf16 for the MXU)
            "wqkv": jnp.concatenate([wq, wk, wv], axis=1).astype(jnp.bfloat16),
            "wo": (jax.random.normal(k[3], (H * hd, D), jnp.float32) * 0.02
                   ).astype(jnp.bfloat16),
            "w13": jnp.concatenate([w1, w3], axis=1).astype(jnp.bfloat16),
            "w2": (jax.random.normal(k[5], (hidden_dim, D), jnp.float32) * 0.02
                   ).astype(jnp.bfloat16),
            "attn_norm_w": jnp.ones((1, D), jnp.float32),
            "ffn_norm_w": jnp.ones((1, D), jnp.float32),
        }
        params["layers"].append(layer)
    return params


# ----------------------------------------------------------------------------
# Forward pass
# ----------------------------------------------------------------------------

def transformer_forward(params, tokens, start_pos, cfg, cos_all, sin_all, caches):
    B, S = tokens.shape
    D = cfg["dim"]
    H = cfg["n_heads"]
    Hk = cfg["n_kv_heads"]
    hd = D // H
    n_rep = H // Hk
    eps = cfg["norm_eps"]
    hidden = cfg["hidden_dim"]
    T = start_pos + S

    # embedding gather (glue); residual stream kept in f32
    h2d = jnp.take(params["tok_embeddings"], tokens, axis=0).reshape(B * S, D)

    cos = jax.lax.dynamic_slice_in_dim(cos_all, start_pos, S, axis=0)
    sin = jax.lax.dynamic_slice_in_dim(sin_all, start_pos, S, axis=0)

    # causal mask [S, T] (all-zeros when S == 1, i.e. the mask=None path)
    tri = jnp.triu(jnp.full((S, S), float("-inf"), jnp.float32), k=1)
    mask = jnp.concatenate([jnp.zeros((S, start_pos), jnp.float32), tri], axis=1)

    new_caches = []
    for li, layer in enumerate(params["layers"]):
        # ---- attention block: fused rmsnorm + fused QKV projection ----
        xqkv = rmsnorm_matmul(h2d, layer["attn_norm_w"], layer["wqkv"], eps)
        q_sz, kv_sz = H * hd, Hk * hd
        xq = xqkv[:, :q_sz].reshape(B, S, H, hd)
        xk = xqkv[:, q_sz:q_sz + kv_sz].reshape(B, S, Hk, hd)
        xv = xqkv[:, q_sz + kv_sz:].reshape(B, S, Hk, hd)

        xq, xk = apply_rotary_emb(xq, xk, cos, sin)

        # persistent per-layer KV cache (correct for start_pos > 0)
        cache_k, cache_v = caches[li]
        cache_k = jax.lax.dynamic_update_slice(cache_k, xk, (0, start_pos, 0, 0))
        cache_v = jax.lax.dynamic_update_slice(cache_v, xv, (0, start_pos, 0, 0))
        new_caches.append((cache_k, cache_v))

        keys = cache_k[:B, :T]           # [B, T, Hk, hd]  (no repeat_kv)
        values = cache_v[:B, :T]

        q_t = jnp.transpose(xq, (0, 2, 1, 3))        # [B, H,  S, hd]
        k_t = jnp.transpose(keys, (0, 2, 1, 3))      # [B, Hk, T, hd]
        v_t = jnp.transpose(values, (0, 2, 1, 3))    # [B, Hk, T, hd]

        attn = pallas_attention(q_t, k_t, v_t, mask, n_rep, hd)   # [B, H, S, hd]
        attn2d = jnp.transpose(attn, (0, 2, 1, 3)).reshape(B * S, H * hd)

        # wo projection with fused residual add
        h2d = matmul_residual(attn2d.astype(jnp.bfloat16), layer["wo"], h2d)

        # ---- feed-forward: fused rmsnorm + (w1|w3), fused silu-gate + w2 ----
        gcat = rmsnorm_matmul(h2d, layer["ffn_norm_w"], layer["w13"], eps)
        g1 = gcat[:, :hidden]
        g3 = gcat[:, hidden:]
        h2d = gate_matmul_residual(g1, g3, layer["w2"], h2d)

    # final norm fused with the output projection
    logits = rmsnorm_matmul(h2d, params["norm_w"], params["output_w"], eps)
    return logits.reshape(B, S, cfg["vocab_size"]), new_caches


# ----------------------------------------------------------------------------
# Main
# ----------------------------------------------------------------------------

if __name__ == "__main__":
    cfg = dict(
        dim=64,
        n_heads=4,
        n_kv_heads=2,
        n_layers=2,
        vocab_size=128,
        multiple_of=32,
        ffn_dim_multiplier=None,
        norm_eps=1e-6,
        rope_theta=10000.0,
        max_batch_size=2,
        max_seq_len=16,
    )
    # TODO(synk): apply_scaling (use_scaled_rope=True path) not implemented;
    # this matches use_scaled_rope=False.

    key = jax.random.PRNGKey(0)
    pkey, tkey = jax.random.split(key)
    params = init_params(pkey, cfg)

    B, S = cfg["max_batch_size"], 8
    start_pos = 0
    tokens = jax.random.randint(tkey, (B, S), 0, cfg["vocab_size"], dtype=jnp.int32)

    head_dim = cfg["dim"] // cfg["n_heads"]
    cos_all, sin_all = precompute_freqs_cos_sin(
        head_dim, cfg["max_seq_len"] * 2, cfg["rope_theta"])

    caches = init_kv_caches(cfg)
    logits, caches = transformer_forward(
        params, tokens, start_pos, cfg, cos_all, sin_all, caches)
    jax.block_until_ready(logits)
    assert logits.shape == (B, S, cfg["vocab_size"])
    assert logits.dtype == jnp.float32
    print("KERNEL_OK")
</pallas_src>

<mosaic_0001>
module attributes {stable_mosaic.version = 11 : i64} {
  func.func @_rmsnorm_matmul_kernel(%arg0: i32, %arg1: i32, %arg2: memref<16x64xf32, #tpu.memory_space<vmem>>, %arg3: memref<1x64xf32, #tpu.memory_space<vmem>>, %arg4: memref<64x128xbf16, #tpu.memory_space<vmem>>, %arg5: memref<16x128xf32, #tpu.memory_space<vmem>>) attributes {dimension_semantics = [#tpu.dimension_semantics<parallel>, #tpu.dimension_semantics<parallel>], iteration_bounds = array<i64: 1, 1>, scalar_prefetch = 0 : i64, scratch_operands = 0 : i64, tpu.core_type = #tpu.core_type<tc>, window_params = [{transform_indices = @transform_0, window_bounds = array<i64: 16, 64>}, {pipeline_mode = #tpu.pipeline_mode<synchronous>, transform_indices = @transform_1, window_bounds = array<i64: 1, 64>}, {transform_indices = @transform_2, window_bounds = array<i64: 64, 128>}, {transform_indices = @transform_3, window_bounds = array<i64: 16, 128>}]} {
    %c0 = arith.constant 0 : index
    %c0_0 = arith.constant 0 : index
    %0 = vector.load %arg2[%c0, %c0_0] : memref<16x64xf32, #tpu.memory_space<vmem>>, vector<16x64xf32>
    %1 = arith.mulf %0, %0 : vector<16x64xf32>
    %cst = arith.constant dense<0.000000e+00> : vector<16xf32>
    %2 = vector.multi_reduction <add>, %1, %cst [1] : vector<16x64xf32> to vector<16xf32>
    %3 = vector.shape_cast %2 : vector<16xf32> to vector<16x1xf32>
    %cst_1 = arith.constant 6.400000e+01 : f32
    %4 = vector.broadcast %cst_1 : f32 to vector<16x1xf32>
    %5 = arith.divf %3, %4 : vector<16x1xf32>
    %cst_2 = arith.constant 9.99999997E-7 : f32
    %6 = vector.broadcast %cst_2 : f32 to vector<16x1xf32>
    %7 = arith.addf %5, %6 : vector<16x1xf32>
    %8 = math.rsqrt %7 : vector<16x1xf32>
    %9 = vector.broadcast %8 : vector<16x1xf32> to vector<16x64xf32>
    %10 = arith.mulf %0, %9 : vector<16x64xf32>
    %c0_3 = arith.constant 0 : index
    %c0_4 = arith.constant 0 : index
    %11 = vector.load %arg3[%c0_3, %c0_4] : memref<1x64xf32, #tpu.memory_space<vmem>>, vector<1x64xf32>
    %12 = vector.broadcast %11 : vector<1x64xf32> to vector<16x64xf32>
    %13 = arith.mulf %10, %12 : vector<16x64xf32>
    %14 = arith.truncf %13 : vector<16x64xf32> to vector<16x64xbf16>
    %c0_5 = arith.constant 0 : index
    %c0_6 = arith.constant 0 : index
    %15 = vector.load %arg4[%c0_5, %c0_6] : memref<64x128xbf16, #tpu.memory_space<vmem>>, vector<64x128xbf16>
    %cst_7 = arith.constant dense<0.000000e+00> : vector<16x128xf32>
    %16 = tpu.matmul %14, %15, %cst_7 {dimension_numbers = #tpu.dot_dimension_numbers<[1], [0], [0], [1], [0, 0, 1, 1], [], []>} : vector<16x64xbf16>, vector<64x128xbf16>, vector<16x128xf32> -> vector<16x128xf32>
    %c0_8 = arith.constant 0 : index
    %c0_9 = arith.constant 0 : index
    %17 = vector.load %arg5[%c0_8, %c0_9] : memref<16x128xf32, #tpu.memory_space<vmem>>, vector<16x128xf32>
    tpu.vector_store %arg5[%c0_8, %c0_9], %16 {strides = array<i32>} : memref<16x128xf32, #tpu.memory_space<vmem>>, vector<16x128xf32>,
    return
  }
  func.func @transform_0(%arg0: i32, %arg1: i32) -> (i32, i32) {
    %c0_i32 = arith.constant 0 : i32
    %c0_i32_0 = arith.constant 0 : i32
    return %arg0, %c0_i32 : i32, i32
  }
  func.func @transform_1(%arg0: i32, %arg1: i32) -> (i32, i32) {
    %c0_i32 = arith.constant 0 : i32
    %c0_i32_0 = arith.constant 0 : i32
    %c0_i32_1 = arith.constant 0 : i32
    return %c0_i32, %c0_i32_0 : i32, i32
  }
  func.func @transform_2(%arg0: i32, %arg1: i32) -> (i32, i32) {
    %c0_i32 = arith.constant 0 : i32
    %c0_i32_0 = arith.constant 0 : i32
    return %c0_i32, %arg1 : i32, i32
  }
  func.func @transform_3(%arg0: i32, %arg1: i32) -> (i32, i32) {
    %c0_i32 = arith.constant 0 : i32
    return %arg0, %arg1 : i32, i32
  }
}

</mosaic_0001>

<llo_original>
// kernel: tpu_custom_call.1
$region0: #{tpu_custom_call.1}
  #allocation0 [shape = 'u32[]', space=smem, size = 0x4, offset = 0x4, fixed_abs, tag = 'smem constant byte address 0x4 - core index']
  #allocation1 [shape = 'u32[72,128]{1,0:T(1,128)}', space=vmem, size = 0x9000, scoped, tag = 'internal scratch']
  %s0 = inlined_call_operand.hbm [shape: f32[16,64], index: 0, kind: input, shape index: {}]
  %s1 = inlined_call_operand.hbm [shape: f32[1,64], index: 1, kind: input, shape index: {}]
  %s2 = inlined_call_operand.hbm [shape: bf16[64,128], index: 2, kind: input, shape index: {}]
  %s3 = inlined_call_operand.hbm [shape: f32[16,128], index: 3, kind: output, shape index: {}]
  %s4 = sld [smem:[#allocation0]]
  $region34: #{tpu_custom_call.1} parent=0
    _
  %s6 = ssub.s32 1, %s4
  %s7 = scalar_select 0, %s6, %s4
  $region1: #{tpu_custom_call.1} parent=0
    #allocation2 [shape = 'u8[8192]{0}', space=vmem, size = 0x2000, scoped, tag = 'input window, operand 0, single buffered']
    #allocation3 [shape = 's32[1]{0}', space=sflag, size = 0x4, scoped, tag = 'scoped memory for tpu_custom_call.1']
    #allocation4 [shape = 's32[1]{0}', space=sflag, size = 0x4, scoped, tag = 'scoped memory for tpu_custom_call.1']
    #allocation5 [shape = 'u8[512]{0}', space=vmem, size = 0x400, scoped, tag = 'input window, operand 1, single buffered']
    #allocation6 [shape = 's32[1]{0}', space=sflag, size = 0x4, scoped, tag = 'scoped memory for tpu_custom_call.1']
    #allocation7 [shape = 'u8[16384]{0}', space=vmem, size = 0x4000, scoped, tag = 'input window, operand 2, single buffered']
    #allocation8 [shape = 'u8[8192]{0}', space=vmem, size = 0x2000, scoped, tag = 'output window, operand 0, single buffered']
    %8 = vsyncpa [#allocation3], 0
    %9 = vsyncpa [#allocation6], 0
    %10 = vsyncpa [#allocation4], 0
    // Predicated region
    $region2: #{tpu_custom_call.1} parent=1 // pred_check
      _
    $region3: #{tpu_custom_call.1} parent=1 // pred_check_branch
      %12 = sbr.rel (0) target = $region5
    $region4: #{tpu_custom_call.1} parent=1 // pred_region
      %14 = vsyncadd [#allocation3], 0
      %s15 = sshll.u32 %s0, 4
      %s16 = int_to_ptr.hbm [resolvable:$true] %s15
      %s17 = sshll.u32 [#allocation2], 4
      %s18 = int_to_ptr.vmem [resolvable:$true] %s17
      %23 = dma.hbm_to_vmem [thread:$0]  %s16, 256, %s18, [#allocation3], 128, 128, 8
    $region5: #{tpu_custom_call.1} parent=1 // pred_fallthru
      _
    // Predicated region
    $region6: #{tpu_custom_call.1} parent=1 // pred_check
      _
    $region7: #{tpu_custom_call.1} parent=1 // pred_check_branch
      %25 = sbr.rel (0) target = $region9
    $region8: #{tpu_custom_call.1} parent=1 // pred_region
      %27 = vsyncadd [#allocation6], 0
      %s29 = sshll.u32 %s1, 4
      %s30 = int_to_ptr.hbm [resolvable:$true] %s29
      %s31 = sshll.u32 [#allocation5], 4
      %s32 = int_to_ptr.vmem [resolvable:$true] %s31
      %34 = dma.hbm_to_vmem [thread:$0]  %s30, 16, %s32, [#allocation6]
    $region9: #{tpu_custom_call.1} parent=1 // pred_fallthru
      _
    // Predicated region
    $region10: #{tpu_custom_call.1} parent=1 // pred_check
      _
    $region11: #{tpu_custom_call.1} parent=1 // pred_check_branch
      %36 = sbr.rel (0) target = $region13
    $region12: #{tpu_custom_call.1} parent=1 // pred_region
      %38 = vsyncadd [#allocation6], 0
      %s39 = sshll.u32 %s2, 4
      %s40 = int_to_ptr.hbm [resolvable:$true] %s39
      %s41 = sshll.u32 [#allocation7], 4
      %s42 = int_to_ptr.vmem [resolvable:$true] %s41
      %47 = dma.hbm_to_vmem [thread:$0]  %s40, 512, %s42, [#allocation6], 64, 64, 4
    $region13: #{tpu_custom_call.1} parent=1 // pred_fallthru
      _
    // Predicated region
    $region14: #{tpu_custom_call.1} parent=1 // pred_check
      _
    $region15: #{tpu_custom_call.1} parent=1 // pred_check_branch
      %49 = sbr.rel (0) target = $region17
    $region16: #{tpu_custom_call.1} parent=1 // pred_region
      %51 = dma.done [#allocation3], 256
    $region17: #{tpu_custom_call.1} parent=1 // pred_fallthru
      _
    // Predicated region
    $region18: #{tpu_custom_call.1} parent=1 // pred_check
      _
    $region19: #{tpu_custom_call.1} parent=1 // pred_check_branch
      %53 = sbr.rel (0) target = $region21
    $region20: #{tpu_custom_call.1} parent=1 // pred_region
      %55 = dma.done [#allocation6], 16
    $region21: #{tpu_custom_call.1} parent=1 // pred_fallthru
      _
    // Predicated region
    $region22: #{tpu_custom_call.1} parent=1 // pred_check
      _
    $region23: #{tpu_custom_call.1} parent=1 // pred_check_branch
      %57 = sbr.rel (0) target = $region25
    $region24: #{tpu_custom_call.1} parent=1 // pred_region
      %59 = dma.done [#allocation6], 512
    $region25: #{tpu_custom_call.1} parent=1 // pred_fallthru
      _
    %v61 = vld [vmem:[#allocation2] sm:$0xff]
    %v62 = vld [vmem:[#allocation2 + $0x8] sm:$0xff]
    %v63 = vmul.f32 %v61, %v61
    %v64 = vmul.f32 %v62, %v62
    %vm65 = vcmask 523264
    %v66 = vsel %vm65, %v63, 0.0
    %67 = vadd.xlane.f32.xlu0 %v66
    %v68 = vpop.xlane.xlu0 %67
    %v69 = vsel %vm65, %v64, 0.0
    %70 = vadd.xlane.f32.xlu0 %v69
    %v71 = vpop.xlane.xlu0 %70
    %v72 = vrcp.pop 64.0
    %v73 = vmul.f32 64.0, %v72
    %v74 = vsub.f32 1.0, %v73
    %v75 = vmul.f32 %v72, %v74
    %v76 = vadd.f32 %v72, %v75
    %vm77 = vweird.f32 %v72
    %v78 = vsel %vm77, %v72, %v76
    %v79 = vmul.f32 %v68, %v78
    %v80 = vmul.f32 %v71, %v78
    %v81 = vadd.f32 %v79, 1e-06
    %v82 = vadd.f32 %v80, 1e-06
    %v83 = vrsqrt.pop %v81
    %v84 = vmul.f32 %v83, %v81
    %v85 = vmul.f32 %v84, %v83
    %v86 = vmul.f32 0.5, %v85
    %v87 = vsub.f32 1.5, %v86
    %v88 = vmul.f32 %v83, %v87
    %vm89 = vweird.f32 %v81
    %vm90 = vweird.f32 %v83
    %vm91 = vmor %vm89, %vm90
    %v92 = vsel %vm91, %v83, %v88
    %v93 = vrsqrt.pop %v82
    %v94 = vmul.f32 %v93, %v82
    %v95 = vmul.f32 %v94, %v93
    %v96 = vmul.f32 0.5, %v95
    %v97 = vsub.f32 1.5, %v96
    %v98 = vmul.f32 %v93, %v97
    %vm99 = vweird.f32 %v82
    %vm100 = vweird.f32 %v93
    %vm101 = vmor %vm99, %vm100
    %v102 = vsel %vm101, %v93, %v98
    %v103 = vmul.f32 %v61, %v92
    %v104 = vmul.f32 %v62, %v102
    %v105 = vld [vmem:[#allocation5] sm:$0x1]
    %v107 = vperm.slane %v105, 0
    %v109 = vmul.f32 %v103, %v107
    %v110 = vmul.f32 %v104, %v107
    %v111 = vpack.c.bf16 %v110, %v109
    %v112 = vld [vmem:[#allocation7] sm:$0xf]
    %v113 = vld [vmem:[#allocation7 + $0x4] sm:$0xf]
    %v114 = vld [vmem:[#allocation7 + $0x8] sm:$0xf]
    %v115 = vld [vmem:[#allocation7 + $0xc] sm:$0xf]
    %v116 = vld [vmem:[#allocation7 + $0x10] sm:$0xf]
    %v117 = vld [vmem:[#allocation7 + $0x14] sm:$0xf]
    %v118 = vld [vmem:[#allocation7 + $0x18] sm:$0xf]
    %v119 = vld [vmem:[#allocation7 + $0x1c] sm:$0xf]
    %v128 = vunpack.c.l.b16 %v112
    %v129 = vunpack.c.l.b16 %v113
    %v130 = vunpack.c.l.b16 %v114
    %v131 = vunpack.c.l.b16 %v115
    %v132 = vunpack.c.l.b16 %v116
    %v133 = vunpack.c.l.b16 %v117
    %v134 = vunpack.c.l.b16 %v118
    %v135 = vunpack.c.l.b16 %v119
    %v136 = vpack.c.b16 %v129, %v128
    %v137 = vpack.c.b16 %v131, %v130
    %v138 = vpack.c.b16 %v133, %v132
    %v139 = vpack.c.b16 %v135, %v134
    %v145 = vsel %vm65, %v111, 0
    %147 = vmatpush.bf16.msra.mxu0 0
    %148 = vmatpush.bf16.msra.mxu0 0
    %149 = vmatpush.bf16.msra.mxu0 0
    %150 = vmatpush.bf16.msra.mxu0 0
    %151 = vmatpush.bf16.msra.mxu0 %v139
    %152 = vmatpush.bf16.msra.mxu0 %v138
    %153 = vmatpush.bf16.msra.mxu0 %v137
    %154 = vmatpush.bf16.msra.mxu0 %v136
    %155 = vmatmul.bf16.gmra.mxu0 %v145
    %v156 = vpop.f32.mrf.mxu0
    %v157 = vadd.f32 0.0, %v156
    %v158 = vpop.f32.mrf.mxu0
    %v159 = vadd.f32 0.0, %v158
    %160 = vdwg.mxu0
    %161 = vst [vmem:[#allocation8] sm:$0xff] %v157
    %162 = vst [vmem:[#allocation8 + $0x8] sm:$0xff] %v159
    // Predicated region
    $region26: #{tpu_custom_call.1} parent=1 // pred_check
      _
    $region27: #{tpu_custom_call.1} parent=1 // pred_check_branch
      %164 = sbr.rel (0) target = $region29
    $region28: #{tpu_custom_call.1} parent=1 // pred_region
      %166 = vsyncadd [#allocation4], 0
      %s167 = sshll.u32 [#allocation8], 4
      %s168 = int_to_ptr.vmem [resolvable:$true] %s167
      %s169 = sshll.u32 %s3, 4
      %s170 = int_to_ptr.hbm [resolvable:$true] %s169
      %175 = dma.vmem_to_hbm [thread:$0]  %s168, 256, %s170, [#allocation4], 128, 128, 8
    $region29: #{tpu_custom_call.1} parent=1 // pred_fallthru
      _
    // Predicated region
    $region30: #{tpu_custom_call.1} parent=1 // pred_check
      _
    $region31: #{tpu_custom_call.1} parent=1 // pred_check_branch
      %177 = sbr.rel (0) target = $region33
    $region32: #{tpu_custom_call.1} parent=1 // pred_region
      %179 = dma.done [#allocation4], 256
    $region33: #{tpu_custom_call.1} parent=1 // pred_fallthru
      _
    %180 = vsyncpa [#allocation3], 1
    %181 = vsyncpa [#allocation6], 1
    %182 = vsyncpa [#allocation4], 1

</llo_original>
